<compile_context>
chip_gen: v6e
topology: v6e:2x2x1
jax: 0.10.0
libtpu: 0.0.40
codegen_flags: <defaults>
</compile_context>

<pallas_src>
import jax
import jax.numpy as jnp
from jax.experimental import pallas as pl
from jax.experimental.pallas import tpu as pltpu

BN_EPS = 1e-5
_VMEM_LIMIT_BYTES = 32 * 1024 * 1024   # <= physical VMEM on v5e/v6e/v7x


def _spatial_attn_kernel(x_ref, w1t_ref, b1_ref, w2c_ref, b2_ref, o_ref):
    """x_ref / o_ref: (bt, C, T) tile — channels on sublanes, spatial on lanes."""
    w1t = w1t_ref[...]          # (Cr, C)  conv1 weight with BN folded in
    b1 = b1_ref[...]            # (Cr, 1)
    w2c = w2c_ref[...]          # (Cr, 1)  conv2 weight as a column
    b2 = b2_ref[...]            # (1, 1)

    # Static (small, bounded) unrolled loop over the batch sub-tile; each step is a
    # lane-dense (C, T) slab.
    for b in range(x_ref.shape[0]):
        x = x_ref[b].astype(jnp.float32)                                 # (C, T)
        # 1x1 conv #1 (+ folded BN) on the MXU, f32 accumulation.
        h = jnp.dot(w1t, x, preferred_element_type=jnp.float32) + b1     # (Cr, T)
        h = jnp.maximum(h, 0.0)                                          # ReLU
        # 1x1 conv #2 has M=1, K=Cr: keep it off the MXU — VPU multiply + tiny
        # cross-sublane (XLU) reduction is cheaper on the per-step critical path.
        a = jnp.sum(h * w2c, axis=0, keepdims=True) + b2                 # (1, T)
        att = jax.nn.sigmoid(a)                                          # (1, T)
        # Gate in f32; cast only at the store (supports bf16 I/O, safe on v5e).
        o_ref[b] = (x * att).astype(o_ref.dtype)


def spatial_attention_with_norm(x_nchw, params, *, tile_bytes=4 << 20,
                                donate_input=False):
    """x_nchw: (B, C, H, W). Returns (B, C, H, W) of the same dtype."""
    B, C, H, W = x_nchw.shape
    Cr = params["w1"].shape[1]
    HW = H * W
    itemsize = jnp.dtype(x_nchw.dtype).itemsize

    # Fold eval-mode BatchNorm into conv1 on the host (exact up to fp rounding).
    scale = params["gamma"] * jax.lax.rsqrt(params["var"] + BN_EPS)      # (1, Cr)
    w1t = (params["w1"] * scale).T                                       # (Cr, C)
    b1t = ((params["b1"] - params["mean"]) * scale + params["beta"]).T   # (Cr, 1)
    w2c = params["w2"]                                                   # (Cr, 1)
    b2 = params["b2"]                                                    # (1, 1)

    # Native layout, no transposes / pads: (B, C, HW), spatial on the lane axis.
    x_rows = x_nchw.reshape(B, C, HW)

    # ---- Tile selection ------------------------------------------------------
    # `tile_bytes` is the per-step x-tile budget.  BlockSpec double-buffers the
    # input and the output tiles, so resident tile memory ~= 4 * tile_bytes,
    # comfortably under the 32 MiB scoped-VMEM limit requested below.
    max_cols = max(128, (tile_bytes // (C * itemsize)) // 128 * 128)
    if HW <= max_cols:
        # Whole spatial extent in one full-dim block (no 128 alignment required,
        # no host pad/slice); fold several batch rows per step so small problems
        # don't degenerate into fixed-overhead micro-steps.
        t = HW
        bt = int(max(1, min(B, tile_bytes // max(1, C * t * itemsize), 8)))
    else:
        # Large feature maps: lane-dense tiles of up to `max_cols` lanes, one
        # batch row per step -> many "parallel" grid steps (keeps both v7x
        # TensorCores busy).  Ragged last spatial block is handled by Pallas.
        t = max_cols
        bt = 1

    grid = (pl.cdiv(B, bt), pl.cdiv(HW, t))

    x_spec = pl.BlockSpec((bt, C, t), lambda b, i: (b, 0, i))
    full = lambda shape: pl.BlockSpec(shape, lambda b, i: (0,) * len(shape))

    flops = 2 * B * HW * C * Cr + 2 * B * HW * Cr + B * HW * C
    bytes_accessed = 2 * B * C * HW * itemsize + (C * Cr + 2 * Cr + 1) * 4

    out = pl.pallas_call(
        _spatial_attn_kernel,
        out_shape=jax.ShapeDtypeStruct((B, C, HW), x_nchw.dtype),
        grid_spec=pltpu.PrefetchScalarGridSpec(
            num_scalar_prefetch=0,
            grid=grid,
            in_specs=[
                x_spec,            # x tile (bt, C, t)
                full((Cr, C)),     # BN-folded conv1 weight (transposed)
                full((Cr, 1)),     # BN-folded conv1 bias
                full((Cr, 1)),     # conv2 weight column
                full((1, 1)),      # conv2 bias
            ],
            out_specs=x_spec,
        ),
        compiler_params=pltpu.CompilerParams(
            dimension_semantics=("parallel", "parallel"),
            vmem_limit_bytes=_VMEM_LIMIT_BYTES),
        cost_estimate=pl.CostEstimate(
            flops=flops, transcendentals=B * HW, bytes_accessed=bytes_accessed),
        input_output_aliases={0: 0} if donate_input else {},
    )(x_rows, w1t, b1t, w2c, b2)

    return out.reshape(B, C, H, W)


def make_params(key, in_channels, reduction=8):
    Cr = in_channels // reduction
    ks = jax.random.split(key, 6)
    w1 = jax.random.normal(ks[0], (in_channels, Cr), jnp.float32) * 0.1
    b1 = jax.random.normal(ks[1], (1, Cr), jnp.float32) * 0.1
    w2 = jax.random.normal(ks[2], (Cr, 1), jnp.float32) * 0.1
    b2 = jax.random.normal(ks[3], (1, 1), jnp.float32) * 0.1
    gamma = 1.0 + 0.1 * jax.random.normal(ks[4], (1, Cr), jnp.float32)
    beta = 0.1 * jax.random.normal(ks[5], (1, Cr), jnp.float32)
    mean = jnp.linspace(-0.2, 0.2, Cr, dtype=jnp.float32).reshape(1, Cr)
    var = jnp.linspace(0.5, 1.5, Cr, dtype=jnp.float32).reshape(1, Cr)
    return {"w1": w1, "b1": b1, "w2": w2, "b2": b2,
            "gamma": gamma, "beta": beta, "mean": mean, "var": var}


def reference(x_nchw, p):
    # Pure-JAX reference of the same math (1x1 convs as einsums), NCHW in/out.
    h = jnp.einsum("bchw,cr->brhw", x_nchw, p["w1"]) + p["b1"].reshape(1, -1, 1, 1)
    scale = (p["gamma"] * jax.lax.rsqrt(p["var"] + BN_EPS)).reshape(1, -1, 1, 1)
    h = (h - p["mean"].reshape(1, -1, 1, 1)) * scale + p["beta"].reshape(1, -1, 1, 1)
    h = jnp.maximum(h, 0.0)
    a = jnp.einsum("brhw,ro->bohw", h, p["w2"]) + p["b2"].reshape(1, 1, 1, 1)
    return x_nchw * jax.nn.sigmoid(a)


if __name__ == "__main__":
    key = jax.random.PRNGKey(0)
    k_x, k_p, k_x2 = jax.random.split(key, 3)

    # in_channels=32, reduction=8 -> hidden=4 (matches the PyTorch module).
    B, C, H, W = 2, 32, 16, 16
    x = jax.random.normal(k_x, (B, C, H, W), jnp.float32)
    params = make_params(k_p, C, reduction=8)

    out = jax.block_until_ready(spatial_attention_with_norm(x, params))
    ref = reference(x, params)
    assert out.shape == (B, C, H, W)
    assert jnp.max(jnp.abs(out - ref)) < 1e-4

    # Ragged spatial extent (HW=225, not a multiple of 128) + odd batch: handled
    # via a full-dim block, no host-side pad/slice, no extra HBM passes.
    B2, H2, W2 = 3, 15, 15
    x2 = jax.random.normal(k_x2, (B2, C, H2, W2), jnp.float32)
    out2 = jax.block_until_ready(spatial_attention_with_norm(x2, params))
    ref2 = reference(x2, params)
    assert jnp.max(jnp.abs(out2 - ref2)) < 1e-4

    print("KERNEL_OK")
</pallas_src>

<mosaic_0001>
module attributes {stable_mosaic.version = 11 : i64} {
  func.func @_spatial_attn_kernel(%arg0: i32, %arg1: i32, %arg2: memref<2x32x256xf32, #tpu.memory_space<vmem>>, %arg3: memref<4x32xf32, #tpu.memory_space<vmem>>, %arg4: memref<4x1xf32, #tpu.memory_space<vmem>>, %arg5: memref<4x1xf32, #tpu.memory_space<vmem>>, %arg6: memref<1x1xf32, #tpu.memory_space<vmem>>, %arg7: memref<2x32x256xf32, #tpu.memory_space<vmem>>) attributes {dimension_semantics = [#tpu.dimension_semantics<parallel>, #tpu.dimension_semantics<parallel>], iteration_bounds = array<i64: 1, 1>, scalar_prefetch = 0 : i64, scratch_operands = 0 : i64, tpu.core_type = #tpu.core_type<tc>, window_params = [{transform_indices = @transform_0, window_bounds = array<i64: 2, 32, 256>}, {pipeline_mode = #tpu.pipeline_mode<synchronous>, transform_indices = @transform_1, window_bounds = array<i64: 4, 32>}, {pipeline_mode = #tpu.pipeline_mode<synchronous>, transform_indices = @transform_2, window_bounds = array<i64: 4, 1>}, {pipeline_mode = #tpu.pipeline_mode<synchronous>, transform_indices = @transform_3, window_bounds = array<i64: 4, 1>}, {pipeline_mode = #tpu.pipeline_mode<synchronous>, transform_indices = @transform_4, window_bounds = array<i64: 1, 1>}, {transform_indices = @transform_5, window_bounds = array<i64: 2, 32, 256>}]} {
    %c0 = arith.constant 0 : index
    %c0_0 = arith.constant 0 : index
    %0 = vector.load %arg3[%c0, %c0_0] : memref<4x32xf32, #tpu.memory_space<vmem>>, vector<4x32xf32>
    %c0_1 = arith.constant 0 : index
    %c0_2 = arith.constant 0 : index
    %1 = vector.load %arg4[%c0_1, %c0_2] : memref<4x1xf32, #tpu.memory_space<vmem>>, vector<4x1xf32>
    %c0_3 = arith.constant 0 : index
    %c0_4 = arith.constant 0 : index
    %2 = vector.load %arg5[%c0_3, %c0_4] : memref<4x1xf32, #tpu.memory_space<vmem>>, vector<4x1xf32>
    %c0_5 = arith.constant 0 : index
    %c0_6 = arith.constant 0 : index
    %3 = vector.load %arg6[%c0_5, %c0_6] : memref<1x1xf32, #tpu.memory_space<vmem>>, vector<1x1xf32>
    %c0_7 = arith.constant 0 : index
    %c0_8 = arith.constant 0 : index
    %c0_9 = arith.constant 0 : index
    %4 = vector.load %arg2[%c0_7, %c0_8, %c0_9] : memref<2x32x256xf32, #tpu.memory_space<vmem>>, vector<1x32x256xf32>
    %5 = vector.shape_cast %4 : vector<1x32x256xf32> to vector<32x256xf32>
    %cst = arith.constant dense<0.000000e+00> : vector<4x256xf32>
    %6 = tpu.matmul %0, %5, %cst {dimension_numbers = #tpu.dot_dimension_numbers<[1], [0], [0], [1], [0, 0, 1, 1], [], []>} : vector<4x32xf32>, vector<32x256xf32>, vector<4x256xf32> -> vector<4x256xf32>
    %7 = vector.broadcast %1 : vector<4x1xf32> to vector<4x256xf32>
    %8 = arith.addf %6, %7 : vector<4x256xf32>
    %cst_10 = arith.constant 0.000000e+00 : f32
    %9 = vector.broadcast %cst_10 : f32 to vector<4x256xf32>
    %10 = arith.maximumf %8, %9 : vector<4x256xf32>
    %11 = vector.broadcast %2 : vector<4x1xf32> to vector<4x256xf32>
    %12 = arith.mulf %10, %11 : vector<4x256xf32>
    %cst_11 = arith.constant dense<0.000000e+00> : vector<256xf32>
    %13 = vector.multi_reduction <add>, %12, %cst_11 [0] : vector<4x256xf32> to vector<256xf32>
    %14 = vector.shape_cast %13 : vector<256xf32> to vector<1x256xf32>
    %15 = vector.broadcast %3 : vector<1x1xf32> to vector<1x256xf32>
    %16 = arith.addf %14, %15 : vector<1x256xf32>
    %17 = arith.negf %16 : vector<1x256xf32>
    %18 = math.exp %17 : vector<1x256xf32>
    %cst_12 = arith.constant 1.000000e+00 : f32
    %19 = vector.broadcast %cst_12 : f32 to vector<1x256xf32>
    %20 = arith.addf %19, %18 : vector<1x256xf32>
    %21 = arith.divf %19, %20 : vector<1x256xf32>
    %22 = vector.broadcast %21 : vector<1x256xf32> to vector<32x256xf32>
    %23 = arith.mulf %5, %22 : vector<32x256xf32>
    %c0_13 = arith.constant 0 : index
    %c0_14 = arith.constant 0 : index
    %c0_15 = arith.constant 0 : index
    %24 = vector.load %arg7[%c0_13, %c0_14, %c0_15] : memref<2x32x256xf32, #tpu.memory_space<vmem>>, vector<1x32x256xf32>
    %25 = vector.shape_cast %24 : vector<1x32x256xf32> to vector<32x256xf32>
    %26 = vector.shape_cast %23 : vector<32x256xf32> to vector<1x32x256xf32>
    tpu.vector_store %arg7[%c0_13, %c0_14, %c0_15], %26 {strides = array<i32>} : memref<2x32x256xf32, #tpu.memory_space<vmem>>, vector<1x32x256xf32>,
    %c1 = arith.constant 1 : index
    %c0_16 = arith.constant 0 : index
    %c0_17 = arith.constant 0 : index
    %27 = vector.load %arg2[%c1, %c0_16, %c0_17] : memref<2x32x256xf32, #tpu.memory_space<vmem>>, vector<1x32x256xf32>
    %28 = vector.shape_cast %27 : vector<1x32x256xf32> to vector<32x256xf32>
    %cst_18 = arith.constant dense<0.000000e+00> : vector<4x256xf32>
    %29 = tpu.matmul %0, %28, %cst_18 {dimension_numbers = #tpu.dot_dimension_numbers<[1], [0], [0], [1], [0, 0, 1, 1], [], []>} : vector<4x32xf32>, vector<32x256xf32>, vector<4x256xf32> -> vector<4x256xf32>
    %30 = vector.broadcast %1 : vector<4x1xf32> to vector<4x256xf32>
    %31 = arith.addf %29, %30 : vector<4x256xf32>
    %cst_19 = arith.constant 0.000000e+00 : f32
    %32 = vector.broadcast %cst_19 : f32 to vector<4x256xf32>
    %33 = arith.maximumf %31, %32 : vector<4x256xf32>
    %34 = vector.broadcast %2 : vector<4x1xf32> to vector<4x256xf32>
    %35 = arith.mulf %33, %34 : vector<4x256xf32>
    %cst_20 = arith.constant dense<0.000000e+00> : vector<256xf32>
    %36 = vector.multi_reduction <add>, %35, %cst_20 [0] : vector<4x256xf32> to vector<256xf32>
    %37 = vector.shape_cast %36 : vector<256xf32> to vector<1x256xf32>
    %38 = vector.broadcast %3 : vector<1x1xf32> to vector<1x256xf32>
    %39 = arith.addf %37, %38 : vector<1x256xf32>
    %40 = arith.negf %39 : vector<1x256xf32>
    %41 = math.exp %40 : vector<1x256xf32>
    %cst_21 = arith.constant 1.000000e+00 : f32
    %42 = vector.broadcast %cst_21 : f32 to vector<1x256xf32>
    %43 = arith.addf %42, %41 : vector<1x256xf32>
    %44 = arith.divf %42, %43 : vector<1x256xf32>
    %45 = vector.broadcast %44 : vector<1x256xf32> to vector<32x256xf32>
    %46 = arith.mulf %28, %45 : vector<32x256xf32>
    %c1_22 = arith.constant 1 : index
    %c0_23 = arith.constant 0 : index
    %c0_24 = arith.constant 0 : index
    %47 = vector.load %arg7[%c1_22, %c0_23, %c0_24] : memref<2x32x256xf32, #tpu.memory_space<vmem>>, vector<1x32x256xf32>
    %48 = vector.shape_cast %47 : vector<1x32x256xf32> to vector<32x256xf32>
    %49 = vector.shape_cast %46 : vector<32x256xf32> to vector<1x32x256xf32>
    tpu.vector_store %arg7[%c1_22, %c0_23, %c0_24], %49 {strides = array<i32>} : memref<2x32x256xf32, #tpu.memory_space<vmem>>, vector<1x32x256xf32>,
    return
  }
  func.func @transform_0(%arg0: i32, %arg1: i32) -> (i32, i32, i32) {
    %c0_i32 = arith.constant 0 : i32
    %c0_i32_0 = arith.constant 0 : i32
    return %arg0, %c0_i32, %arg1 : i32, i32, i32
  }
  func.func @transform_1(%arg0: i32, %arg1: i32) -> (i32, i32) {
    %c0_i32 = arith.constant 0 : i32
    %c0_i32_0 = arith.constant 0 : i32
    %c0_i32_1 = arith.constant 0 : i32
    return %c0_i32, %c0_i32_0 : i32, i32
  }
  func.func @transform_2(%arg0: i32, %arg1: i32) -> (i32, i32) {
    %c0_i32 = arith.constant 0 : i32
    %c0_i32_0 = arith.constant 0 : i32
    %c0_i32_1 = arith.constant 0 : i32
    return %c0_i32, %c0_i32_0 : i32, i32
  }
  func.func @transform_3(%arg0: i32, %arg1: i32) -> (i32, i32) {
    %c0_i32 = arith.constant 0 : i32
    %c0_i32_0 = arith.constant 0 : i32
    %c0_i32_1 = arith.constant 0 : i32
    return %c0_i32, %c0_i32_0 : i32, i32
  }
  func.func @transform_4(%arg0: i32, %arg1: i32) -> (i32, i32) {
    %c0_i32 = arith.constant 0 : i32
    %c0_i32_0 = arith.constant 0 : i32
    %c0_i32_1 = arith.constant 0 : i32
    return %c0_i32, %c0_i32_0 : i32, i32
  }
  func.func @transform_5(%arg0: i32, %arg1: i32) -> (i32, i32, i32) {
    %c0_i32 = arith.constant 0 : i32
    %c0_i32_0 = arith.constant 0 : i32
    return %arg0, %c0_i32, %arg1 : i32, i32, i32
  }
}

</mosaic_0001>

<llo_original>
// kernel: tpu_custom_call.1
$region0: #{tpu_custom_call.1}
  #allocation0 [shape = 'u32[]', space=smem, size = 0x4, offset = 0x4, fixed_abs, tag = 'smem constant byte address 0x4 - core index']
  #allocation1 [shape = 'u32[144,128]{1,0:T(1,128)}', space=vmem, size = 0x12000, scoped, tag = 'internal scratch']
  #allocation2 [shape = 'f32[1,1]{1,0:T(1,128)S(1)}', space=vmem, size = 0x200, scoped, tag = 'scoped memory for tpu_custom_call.1']
  %s0 = inlined_call_operand.hbm [shape: f32[2,32,256], index: 0, kind: input, shape index: {}]
  %s1 = inlined_call_operand.vmem [shape: f32[4,32], index: 1, kind: input, shape index: {}]
  %s2 = inlined_call_operand.vmem [shape: f32[4,1], index: 2, kind: input, shape index: {}]
  %s3 = inlined_call_operand.vmem [shape: f32[4,1], index: 3, kind: input, shape index: {}]
  %s4 = inlined_call_operand.<no memory space> [shape: f32[1,1], index: 4, kind: input, shape index: {}]
  %s5 = inlined_call_operand.hbm [shape: f32[2,32,256], index: 5, kind: output, shape index: {}]
  %s6 = sld [smem:[#allocation0]]
  $region34: #{tpu_custom_call.1} parent=0
    _
  %s8 = ssub.s32 1, %s6
  %s9 = scalar_select 0, %s8, %s6
  %v10 = vstv %s4
  %11 = vst [vmem:[#allocation2] sm:$0x1] %v10
  $region1: #{tpu_custom_call.1} parent=0
    #allocation3 [shape = 'u8[65536]{0}', space=vmem, size = 0x10000, scoped, tag = 'input window, operand 0, single buffered']
    #allocation4 [shape = 's32[1]{0}', space=sflag, size = 0x4, scoped, tag = 'scoped memory for tpu_custom_call.1']
    #allocation5 [shape = 's32[1]{0}', space=sflag, size = 0x4, scoped, tag = 'scoped memory for tpu_custom_call.1']
    #allocation6 [shape = 'u8[65536]{0}', space=vmem, size = 0x10000, scoped, tag = 'output window, operand 0, single buffered']
    %12 = vsyncpa [#allocation4], 0
    %13 = vsyncpa [#allocation5], 0
    // Predicated region
    $region2: #{tpu_custom_call.1} parent=1 // pred_check
      _
    $region3: #{tpu_custom_call.1} parent=1 // pred_check_branch
      %15 = sbr.rel (0) target = $region5
    $region4: #{tpu_custom_call.1} parent=1 // pred_region
      %s17 = ssub.s32 2048, 2048
      %18 = vsyncadd [#allocation4], %s17
      %s19 = sshll.u32 [#allocation3], 4
      %s20 = int_to_ptr.vmem [resolvable:$true] %s19
      %25 = dma.hbm_to_vmem [thread:$0]  %s0, 2048, %s20, [#allocation4], 256, 256, 16
    $region5: #{tpu_custom_call.1} parent=1 // pred_fallthru
      _
    // Predicated region
    $region6: #{tpu_custom_call.1} parent=1 // pred_check
      _
    $region7: #{tpu_custom_call.1} parent=1 // pred_check_branch
      %27 = sbr.rel (0) target = $region9
    $region8: #{tpu_custom_call.1} parent=1 // pred_region
      _
    $region9: #{tpu_custom_call.1} parent=1 // pred_fallthru
      _
    // Predicated region
    $region10: #{tpu_custom_call.1} parent=1 // pred_check
      _
    $region11: #{tpu_custom_call.1} parent=1 // pred_check_branch
      %29 = sbr.rel (0) target = $region13
    $region12: #{tpu_custom_call.1} parent=1 // pred_region
      _
    $region13: #{tpu_custom_call.1} parent=1 // pred_fallthru
      _
    // Predicated region
    $region14: #{tpu_custom_call.1} parent=1 // pred_check
      _
    $region15: #{tpu_custom_call.1} parent=1 // pred_check_branch
      %31 = sbr.rel (0) target = $region17
    $region16: #{tpu_custom_call.1} parent=1 // pred_region
      _
    $region17: #{tpu_custom_call.1} parent=1 // pred_fallthru
      _
    // Predicated region
    $region18: #{tpu_custom_call.1} parent=1 // pred_check
      _
    $region19: #{tpu_custom_call.1} parent=1 // pred_check_branch
      %33 = sbr.rel (0) target = $region21
    $region20: #{tpu_custom_call.1} parent=1 // pred_region
      _
    $region21: #{tpu_custom_call.1} parent=1 // pred_fallthru
      _
    // Predicated region
    $region22: #{tpu_custom_call.1} parent=1 // pred_check
      _
    $region23: #{tpu_custom_call.1} parent=1 // pred_check_branch
      %35 = sbr.rel (0) target = $region25
    $region24: #{tpu_custom_call.1} parent=1 // pred_region
      %36 = dma.done [#allocation4], 2048
    $region25: #{tpu_custom_call.1} parent=1 // pred_fallthru
      _
    %v37 = vld [vmem:[%s1] sm:$0xf]
    %v38 = vld [vmem:[%s2] sm:$0xf]
    %v39 = vld [vmem:[%s3] sm:$0xf]
    %v40 = vld [vmem:[#allocation2] sm:$0x1]
    %v41 = vld [vmem:[#allocation3] sm:$0xff]
    %v42 = vld [vmem:[#allocation3 + $0x8] sm:$0xff]
    %v43 = vld [vmem:[#allocation3 + $0x10] sm:$0xff]
    %v44 = vld [vmem:[#allocation3 + $0x18] sm:$0xff]
    %v45 = vld [vmem:[#allocation3 + $0x20] sm:$0xff]
    %v46 = vld [vmem:[#allocation3 + $0x28] sm:$0xff]
    %v47 = vld [vmem:[#allocation3 + $0x30] sm:$0xff]
    %v48 = vld [vmem:[#allocation3 + $0x38] sm:$0xff]
    %50 = vset.pattern.permute.xlu0 0
    %51 = vperm.xlu0 %50, %v38
    %v52 = vpop.permute.xlu0 %51
    %vm54 = vcmask 261120
    %v56 = vsel %vm54, %v37, 0
    %58 = vmatprep.subr.mxu0 0.0
    %59 = vmatpush1.msra.mxu0 0.0
    %60 = vmatprep.subr.mxu0 0.0
    %61 = vmatpush1.msra.mxu0 0.0
    %62 = vmatprep.subr.mxu0 0.0
    %63 = vmatpush1.msra.mxu0 0.0
    %64 = vmatprep.subr.mxu0 0.0
    %65 = vmatpush1.msra.mxu0 0.0
    %66 = vmatprep.subr.mxu0 0.0
    %67 = vmatpush1.msra.mxu0 0.0
    %68 = vmatprep.subr.mxu0 0.0
    %69 = vmatpush1.msra.mxu0 0.0
    %70 = vmatprep.subr.mxu0 0.0
    %71 = vmatpush1.msra.mxu0 0.0
    %72 = vmatprep.subr.mxu0 0.0
    %73 = vmatpush1.msra.mxu0 0.0
    %74 = vmatprep.subr.mxu0 0.0
    %75 = vmatpush1.msra.mxu0 0.0
    %76 = vmatprep.subr.mxu0 0.0
    %77 = vmatpush1.msra.mxu0 0.0
    %78 = vmatprep.subr.mxu0 0.0
    %79 = vmatpush1.msra.mxu0 0.0
    %80 = vmatprep.subr.mxu0 0.0
    %81 = vmatpush1.msra.mxu0 0.0
    %82 = vmatprep.subr.mxu0 %v48
    %83 = vmatpush1.msra.mxu0 %v47
    %84 = vmatprep.subr.mxu0 %v46
    %85 = vmatpush1.msra.mxu0 %v45
    %86 = vmatprep.subr.mxu0 %v44
    %87 = vmatpush1.msra.mxu0 %v43
    %88 = vmatprep.subr.mxu0 %v42
    %89 = vmatpush1.msra.mxu0 %v41
    %90 = vmatprep.subr.mxu0 0.0
    %91 = vmatpush2.msra.mxu0 0.0
    %92 = vmatprep.subr.mxu0 0.0
    %93 = vmatpush2.msra.mxu0 0.0
    %94 = vmatprep.subr.mxu0 0.0
    %95 = vmatpush2.msra.mxu0 0.0
    %96 = vmatprep.subr.mxu0 0.0
    %97 = vmatpush2.msra.mxu0 0.0
    %98 = vmatprep.subr.mxu0 0.0
    %99 = vmatpush2.msra.mxu0 0.0
    %100 = vmatprep.subr.mxu0 0.0
    %101 = vmatpush2.msra.mxu0 0.0
    %102 = vmatprep.subr.mxu0 0.0
    %103 = vmatpush2.msra.mxu0 0.0
    %104 = vmatprep.subr.mxu0 0.0
    %105 = vmatpush2.msra.mxu0 0.0
    %106 = vmatprep.subr.mxu0 0.0
    %107 = vmatpush2.msra.mxu0 0.0
    %108 = vmatprep.subr.mxu0 0.0
    %109 = vmatpush2.msra.mxu0 0.0
    %110 = vmatprep.subr.mxu0 0.0
    %111 = vmatpush2.msra.mxu0 0.0
    %112 = vmatprep.subr.mxu0 0.0
    %113 = vmatpush2.msra.mxu0 0.0
    %114 = vmatprep.subr.mxu0 0.0
    %115 = vmatpush2.msra.mxu0 0.0
    %116 = vmatprep.subr.mxu0 0.0
    %117 = vmatpush2.msra.mxu0 0.0
    %118 = vmatprep.subr.mxu0 0.0
    %119 = vmatpush2.msra.mxu0 0.0
    %120 = vmatprep.subr.mxu0 0.0
    %121 = vmatpush2.msra.mxu0 0.0
    %122 = vmatprep.mubr.f32.mxu0 0.0
    %123 = vmatmul.mubr.f32.gmra.mxu0 %v56
    %v124 = vpop.f32.mrf.mxu0
    %v125 = vadd.f32 %v52, %v124
    %v126 = vpop.f32.mrf.mxu0
    %v127 = vadd.f32 %v52, %v126
    %128 = vdwg.mxu0
    %v129 = vmax.f32 %v125, 0.0
    %v130 = vmax.f32 %v127, 0.0
    %132 = vset.pattern.permute.xlu0 0
    %133 = vperm.xlu0 %132, %v39
    %v134 = vpop.permute.xlu0 %133
    %v136 = vmul.f32 %v129, %v134
    %v137 = vmul.f32 %v130, %v134
    %vm138 = vcmask 1043456
    %v139 = vsel %vm138, %v136, 0.0
    %v140 = vrot.slane %v139, 4
    %v141 = vadd.f32 %v139, %v140
    %v142 = vrot.slane %v141, 2
    %v143 = vadd.f32 %v141, %v142
    %v144 = vrot.slane %v143, 1
    %v145 = vadd.f32 %v143, %v144
    %v146 = vsel %vm138, %v137, 0.0
    %v147 = vrot.slane %v146, 4
    %v148 = vadd.f32 %v146, %v147
    %v149 = vrot.slane %v148, 2
    %v150 = vadd.f32 %v148, %v149
    %v151 = vrot.slane %v150, 1
    %v152 = vadd.f32 %v150, %v151
    %154 = vset.pattern.permute.xlu0 0
    %155 = vperm.xlu0 %154, %v40
    %v156 = vpop.permute.xlu0 %155
    %v158 = vlaneseq
    %v159 = vshrl.u32 %v158, 7
    %v160 = vsub.s32 0, %v159
    %v161 = vrot.slane %v156, %v160
    %v162 = vadd.f32 %v145, %v161
    %v163 = vadd.f32 %v152, %v161
    %v164 = vxor.u32 %v162, 2147483648
    %v165 = vxor.u32 %v163, 2147483648
    %v166 = vmul.f32 %v164, 1.442695
    %v167 = vpow.pop %v166
    %v168 = vmul.f32 %v165, 1.442695
    %v169 = vpow.pop %v168
    %v170 = vadd.f32 %v167, 1.0
    %v171 = vadd.f32 %v169, 1.0
    %v172 = vrcp.pop %v170
    %v173 = vmul.f32 1.0, %v172
    %v174 = vrcp.pop %v171
    %v175 = vmul.f32 1.0, %v174
    %v176 = vmul.f32 %v41, %v173
    %v177 = vmul.f32 %v42, %v175
    %v178 = vmul.f32 %v43, %v173
    %v179 = vmul.f32 %v44, %v175
    %v180 = vmul.f32 %v45, %v173
    %v181 = vmul.f32 %v46, %v175
    %v182 = vmul.f32 %v47, %v173
    %v183 = vmul.f32 %v48, %v175
    %184 = vst [vmem:[#allocation6] sm:$0xff] %v176
    %185 = vst [vmem:[#allocation6 + $0x8] sm:$0xff] %v177
    %186 = vst [vmem:[#allocation6 + $0x10] sm:$0xff] %v178
    %187 = vst [vmem:[#allocation6 + $0x18] sm:$0xff] %v179
    %188 = vst [vmem:[#allocation6 + $0x20] sm:$0xff] %v180
    %189 = vst [vmem:[#allocation6 + $0x28] sm:$0xff] %v181
    %190 = vst [vmem:[#allocation6 + $0x30] sm:$0xff] %v182
    %191 = vst [vmem:[#allocation6 + $0x38] sm:$0xff] %v183
    %s192 = scalar_lea.vmem [#allocation3], 64
    %v193 = vld [vmem:[%s192] sm:$0xff]
    %v194 = vld [vmem:[%s192 + $0x8] sm:$0xff]
    %v195 = vld [vmem:[%s192 + $0x10] sm:$0xff]
    %v196 = vld [vmem:[%s192 + $0x18] sm:$0xff]
    %v197 = vld [vmem:[%s192 + $0x20] sm:$0xff]
    %v198 = vld [vmem:[%s192 + $0x28] sm:$0xff]
    %v199 = vld [vmem:[%s192 + $0x30] sm:$0xff]
    %v200 = vld [vmem:[%s192 + $0x38] sm:$0xff]
    %201 = vmatprep.subr.mxu0 0.0
    %202 = vmatpush1.msra.mxu0 0.0
    %203 = vmatprep.subr.mxu0 0.0
    %204 = vmatpush1.msra.mxu0 0.0
    %205 = vmatprep.subr.mxu0 0.0
    %206 = vmatpush1.msra.mxu0 0.0
    %207 = vmatprep.subr.mxu0 0.0
    %208 = vmatpush1.msra.mxu0 0.0
    %209 = vmatprep.subr.mxu0 0.0
    %210 = vmatpush1.msra.mxu0 0.0
    %211 = vmatprep.subr.mxu0 0.0
    %212 = vmatpush1.msra.mxu0 0.0
    %213 = vmatprep.subr.mxu0 0.0
    %214 = vmatpush1.msra.mxu0 0.0
    %215 = vmatprep.subr.mxu0 0.0
    %216 = vmatpush1.msra.mxu0 0.0
    %217 = vmatprep.subr.mxu0 0.0
    %218 = vmatpush1.msra.mxu0 0.0
    %219 = vmatprep.subr.mxu0 0.0
    %220 = vmatpush1.msra.mxu0 0.0
    %221 = vmatprep.subr.mxu0 0.0
    %222 = vmatpush1.msra.mxu0 0.0
    %223 = vmatprep.subr.mxu0 0.0
    %224 = vmatpush1.msra.mxu0 0.0
    %225 = vmatprep.subr.mxu0 %v200
    %226 = vmatpush1.msra.mxu0 %v199
    %227 = vmatprep.subr.mxu0 %v198
    %228 = vmatpush1.msra.mxu0 %v197
    %229 = vmatprep.subr.mxu0 %v196
    %230 = vmatpush1.msra.mxu0 %v195
    %231 = vmatprep.subr.mxu0 %v194
    %232 = vmatpush1.msra.mxu0 %v193
    %233 = vmatprep.subr.mxu0 0.0
    %234 = vmatpush2.msra.mxu0 0.0
    %235 = vmatprep.subr.mxu0 0.0
    %236 = vmatpush2.msra.mxu0 0.0
    %237 = vmatprep.subr.mxu0 0.0
    %238 = vmatpush2.msra.mxu0 0.0
    %239 = vmatprep.subr.mxu0 0.0
    %240 = vmatpush2.msra.mxu0 0.0
    %241 = vmatprep.subr.mxu0 0.0
    %242 = vmatpush2.msra.mxu0 0.0
    %243 = vmatprep.subr.mxu0 0.0
    %244 = vmatpush2.msra.mxu0 0.0
    %245 = vmatprep.subr.mxu0 0.0
    %246 = vmatpush2.msra.mxu0 0.0
    %247 = vmatprep.subr.mxu0 0.0
    %248 = vmatpush2.msra.mxu0 0.0
    %249 = vmatprep.subr.mxu0 0.0
    %250 = vmatpush2.msra.mxu0 0.0
    %251 = vmatprep.subr.mxu0 0.0
    %252 = vmatpush2.msra.mxu0 0.0
    %253 = vmatprep.subr.mxu0 0.0
    %254 = vmatpush2.msra.mxu0 0.0
    %255 = vmatprep.subr.mxu0 0.0
    %256 = vmatpush2.msra.mxu0 0.0
    %257 = vmatprep.subr.mxu0 0.0
    %258 = vmatpush2.msra.mxu0 0.0
    %259 = vmatprep.subr.mxu0 0.0
    %260 = vmatpush2.msra.mxu0 0.0
    %261 = vmatprep.subr.mxu0 0.0
    %262 = vmatpush2.msra.mxu0 0.0
    %263 = vmatprep.subr.mxu0 0.0
    %264 = vmatpush2.msra.mxu0 0.0
    %265 = vmatprep.mubr.f32.mxu0 0.0
    %266 = vmatmul.mubr.f32.gmra.mxu0 %v56
    %v267 = vpop.f32.mrf.mxu0
    %v268 = vadd.f32 %v52, %v267
    %v269 = vpop.f32.mrf.mxu0
    %v270 = vadd.f32 %v52, %v269
    %271 = vdwg.mxu0
    %v272 = vmax.f32 %v268, 0.0
    %v273 = vmax.f32 %v270, 0.0
    %v274 = vmul.f32 %v272, %v134
    %v275 = vmul.f32 %v273, %v134
    %v276 = vsel %vm138, %v274, 0.0
    %v277 = vrot.slane %v276, 4
    %v278 = vadd.f32 %v276, %v277
    %v279 = vrot.slane %v278, 2
    %v280 = vadd.f32 %v278, %v279
    %v281 = vrot.slane %v280, 1
    %v282 = vadd.f32 %v280, %v281
    %v283 = vsel %vm138, %v275, 0.0
    %v284 = vrot.slane %v283, 4
    %v285 = vadd.f32 %v283, %v284
    %v286 = vrot.slane %v285, 2
    %v287 = vadd.f32 %v285, %v286
    %v288 = vrot.slane %v287, 1
    %v289 = vadd.f32 %v287, %v288
    %v290 = vadd.f32 %v282, %v161
    %v291 = vadd.f32 %v289, %v161
    %v292 = vxor.u32 %v290, 2147483648
    %v293 = vxor.u32 %v291, 2147483648
    %v294 = vmul.f32 %v292, 1.442695
    %v295 = vpow.pop %v294
    %v296 = vmul.f32 %v293, 1.442695
    %v297 = vpow.pop %v296
    %v298 = vadd.f32 %v295, 1.0
    %v299 = vadd.f32 %v297, 1.0
    %v300 = vrcp.pop %v298
    %v301 = vmul.f32 1.0, %v300
    %v302 = vrcp.pop %v299
    %v303 = vmul.f32 1.0, %v302
    %v304 = vmul.f32 %v193, %v301
    %v305 = vmul.f32 %v194, %v303
    %v306 = vmul.f32 %v195, %v301
    %v307 = vmul.f32 %v196, %v303
    %v308 = vmul.f32 %v197, %v301
    %v309 = vmul.f32 %v198, %v303
    %v310 = vmul.f32 %v199, %v301
    %v311 = vmul.f32 %v200, %v303
    %s312 = scalar_lea.vmem [#allocation6], 64
    %313 = vst [vmem:[%s312] sm:$0xff] %v304
    %314 = vst [vmem:[%s312 + $0x8] sm:$0xff] %v305
    %315 = vst [vmem:[%s312 + $0x10] sm:$0xff] %v306
    %316 = vst [vmem:[%s312 + $0x18] sm:$0xff] %v307
    %317 = vst [vmem:[%s312 + $0x20] sm:$0xff] %v308
    %318 = vst [vmem:[%s312 + $0x28] sm:$0xff] %v309
    %319 = vst [vmem:[%s312 + $0x30] sm:$0xff] %v310
    %320 = vst [vmem:[%s312 + $0x38] sm:$0xff] %v311
    // Predicated region
    $region26: #{tpu_custom_call.1} parent=1 // pred_check
      _
    $region27: #{tpu_custom_call.1} parent=1 // pred_check_branch
      %322 = sbr.rel (0) target = $region29
    $region28: #{tpu_custom_call.1} parent=1 // pred_region
      %s324 = ssub.s32 2048, 2048
      %325 = vsyncadd [#allocation5], %s324
      %s326 = sshll.u32 [#allocation6], 4
      %s327 = int_to_ptr.vmem [resolvable:$true] %s326
      %332 = dma.vmem_to_hbm [thread:$0]  %s327, 2048, %s5, [#allocation5], 256, 256, 16
    $region29: #{tpu_custom_call.1} parent=1 // pred_fallthru
      _
    // Predicated region
    $region30: #{tpu_custom_call.1} parent=1 // pred_check
      _
    $region31: #{tpu_custom_call.1} parent=1 // pred_check_branch
      %334 = sbr.rel (0) target = $region33
    $region32: #{tpu_custom_call.1} parent=1 // pred_region
      %335 = dma.done [#allocation5], 2048
    $region33: #{tpu_custom_call.1} parent=1 // pred_fallthru
      _
    %336 = vsyncpa [#allocation4], 1
    %337 = vsyncpa [#allocation5], 1

</llo_original>
